<compile_context>
chip_gen: v7x
topology: tpu7x:2x2x1
jax: 0.10.0
libtpu: 0.0.40
codegen_flags: <defaults>
</compile_context>

<pallas_src>
import jax
import jax.numpy as jnp
from jax.experimental import pallas as pl
from jax.experimental.pallas import tpu as pltpu

LANES = 128      # lane width of one batch group
MAX_SUB = 32     # max sublanes per grid step -> up to 4096 examples / step


def policy_kernel(x_ref, w1_ref, b1_ref, w2_ref, b2_ref, probs_ref):
    """x_ref: (1, s, SUB, LANES) VMEM; weights/biases in SMEM;
    probs_ref: (1, a, SUB, LANES) VMEM."""
    _, s_size, _, _ = x_ref.shape
    h_size = b1_ref.shape[0]
    a_size = b2_ref.shape[0]

    # per-feature batch slabs, each a dense (SUB, LANES) tile
    x = [x_ref[0, i] for i in range(s_size)]

    # ---- layer 1: hidden_j = relu(sum_i w1[i,j]*x_i + b1[j])  (VPU FMAs) ----
    hidden = []
    for j in range(h_size):
        acc = w1_ref[0, j] * x[0]
        for i in range(1, s_size):
            acc = acc + w1_ref[i, j] * x[i]
        hidden.append(jnp.maximum(acc + b1_ref[j], 0.0))

    # ---- layer 2: logits_k = sum_j w2[j,k]*hidden_j + b2[k] ----------------
    logits = []
    for k in range(a_size):
        acc = w2_ref[0, k] * hidden[0]
        for j in range(1, h_size):
            acc = acc + w2_ref[j, k] * hidden[j]
        logits.append(acc + b2_ref[k])

    # ---- softmax over the (tiny) action axis: elementwise per slab ----------
    m = logits[0]
    for l in logits[1:]:
        m = jnp.maximum(m, l)
    exps = [jnp.exp(l - m) for l in logits]
    denom = exps[0]
    for e in exps[1:]:
        denom = denom + e
    inv = 1.0 / denom
    for k in range(a_size):
        probs_ref[0, k] = exps[k] * inv      # dense (SUB,LANES) unmasked stores


def simple_policy_forward(x, w1, b1, w2, b2):
    """x: [B, s] f32; w1: [s, h]; b1: [h]; w2: [h, a]; b2: [a].
    Returns probs [B, a] (parameters of the Categorical distribution)."""
    B, s_size = x.shape
    h_size = w1.shape[1]
    a_size = w2.shape[1]

    # block geometry: SUB sublanes x 128 lanes of examples per grid step
    sub = max(8, min(MAX_SUB, pl.cdiv(B, LANES)))
    sub = ((sub + 7) // 8) * 8
    blk = sub * LANES
    b_pad = pl.cdiv(B, blk) * blk
    num_blocks = b_pad // blk

    # layout plumbing (plain JAX): pad batch, put examples on (sublane, lane)
    xf = x.astype(jnp.float32)
    if b_pad != B:
        xf = jnp.pad(xf, ((0, b_pad - B), (0, 0)))
    # [b_pad, s] -> [num_blocks, s, sub, LANES]
    x_k = xf.reshape(num_blocks, sub, LANES, s_size).transpose(0, 3, 1, 2)

    w1k = w1.astype(jnp.float32)
    b1k = b1.astype(jnp.float32)
    w2k = w2.astype(jnp.float32)
    b2k = b2.astype(jnp.float32)

    smem_spec = pl.BlockSpec(memory_space=pltpu.MemorySpace.SMEM)

    probs_k = pl.pallas_call(
        policy_kernel,
        out_shape=jax.ShapeDtypeStruct((num_blocks, a_size, sub, LANES),
                                       jnp.float32),
        grid=(num_blocks,),
        in_specs=[
            pl.BlockSpec((1, s_size, sub, LANES), lambda g: (g, 0, 0, 0)),
            smem_spec,   # w1 [s, h]
            smem_spec,   # b1 [h]
            smem_spec,   # w2 [h, a]
            smem_spec,   # b2 [a]
        ],
        out_specs=pl.BlockSpec((1, a_size, sub, LANES),
                               lambda g: (g, 0, 0, 0)),
        compiler_params=pltpu.CompilerParams(
            dimension_semantics=("parallel",)),
    )(x_k, w1k, b1k, w2k, b2k)

    # [num_blocks, a, sub, LANES] -> [b_pad, a] -> [B, a]
    probs = probs_k.transpose(0, 2, 3, 1).reshape(b_pad, a_size)[:B]
    return probs


def categorical_sample_and_logp(key, probs):
    """Plain-JAX stand-in for torch.distributions.Categorical(probs).sample()
    and .log_prob(action)."""
    action = jax.random.categorical(key, jnp.log(probs), axis=-1)
    log_prob = jnp.log(probs[jnp.arange(probs.shape[0]), action])
    return action.astype(jnp.int32), log_prob


def init_params(key, s_size=4, h_size=16, a_size=2):
    """Mimics PyTorch nn.Linear default init (uniform +/- 1/sqrt(fan_in)).
    Weights stored as [in, out] (transposed vs. PyTorch's [out, in])."""
    k1, k2, k3, k4 = jax.random.split(key, 4)
    bound1 = 1.0 / jnp.sqrt(jnp.float32(s_size))
    bound2 = 1.0 / jnp.sqrt(jnp.float32(h_size))
    w1 = jax.random.uniform(k1, (s_size, h_size), jnp.float32, -bound1, bound1)
    b1 = jax.random.uniform(k2, (h_size,), jnp.float32, -bound1, bound1)
    w2 = jax.random.uniform(k3, (h_size, a_size), jnp.float32, -bound2, bound2)
    b2 = jax.random.uniform(k4, (a_size,), jnp.float32, -bound2, bound2)
    return w1, b1, w2, b2


if __name__ == "__main__":
    s_size, h_size, a_size = 4, 16, 2
    batch = 8

    key = jax.random.PRNGKey(0)
    k_params, k_x, k_sample = jax.random.split(key, 3)
    w1, b1, w2, b2 = init_params(k_params, s_size, h_size, a_size)
    x = jax.random.normal(k_x, (batch, s_size), dtype=jnp.float32)

    probs = simple_policy_forward(x, w1, b1, w2, b2)
    probs = jax.block_until_ready(probs)

    # plain-JAX reference for the forward pass
    h_ref = jnp.maximum(x @ w1 + b1[None, :], 0.0)
    logits_ref = h_ref @ w2 + b2[None, :]
    probs_ref = jax.nn.softmax(logits_ref, axis=-1)

    assert probs.shape == (batch, a_size)
    assert jnp.allclose(probs, probs_ref, atol=1e-5), "probs mismatch vs reference"
    assert jnp.allclose(jnp.sum(probs, axis=-1), 1.0, atol=1e-5)

    # Categorical(probs) usage: sample + log_prob (plain JAX on top of kernel)
    action, log_prob = categorical_sample_and_logp(k_sample, probs)
    action = jax.block_until_ready(action)
    assert action.shape == (batch,) and action.dtype == jnp.int32
    assert bool(jnp.all((action >= 0) & (action < a_size)))
    picked = probs_ref[jnp.arange(batch), action]
    assert jnp.allclose(log_prob, jnp.log(picked), atol=1e-4), "log_prob mismatch"

    print("KERNEL_OK")
</pallas_src>

<mosaic_0001>
module attributes {stable_mosaic.version = 11 : i64} {
  func.func @policy_kernel(%arg0: i32, %arg1: memref<1x4x8x128xf32, #tpu.memory_space<vmem>>, %arg2: memref<4x16xf32, #tpu.memory_space<smem>>, %arg3: memref<16xf32, #tpu.memory_space<smem>>, %arg4: memref<16x2xf32, #tpu.memory_space<smem>>, %arg5: memref<2xf32, #tpu.memory_space<smem>>, %arg6: memref<1x2x8x128xf32, #tpu.memory_space<vmem>>) attributes {dimension_semantics = [#tpu.dimension_semantics<parallel>], iteration_bounds = array<i64: 1>, scalar_prefetch = 0 : i64, scratch_operands = 0 : i64, tpu.core_type = #tpu.core_type<tc>, window_params = [{transform_indices = @transform_0, window_bounds = array<i64: 1, 4, 8, 128>}, {transform_indices = @transform_1, window_bounds = array<i64: 4, 16>}, {transform_indices = @transform_2, window_bounds = array<i64: 16>}, {transform_indices = @transform_3, window_bounds = array<i64: 16, 2>}, {transform_indices = @transform_4, window_bounds = array<i64: 2>}, {transform_indices = @transform_5, window_bounds = array<i64: 1, 2, 8, 128>}]} {
    %c0 = arith.constant 0 : index
    %c0_0 = arith.constant 0 : index
    %c0_1 = arith.constant 0 : index
    %c0_2 = arith.constant 0 : index
    %0 = vector.load %arg1[%c0, %c0_0, %c0_1, %c0_2] : memref<1x4x8x128xf32, #tpu.memory_space<vmem>>, vector<1x1x8x128xf32>
    %1 = vector.shape_cast %0 : vector<1x1x8x128xf32> to vector<8x128xf32>
    %c0_3 = arith.constant 0 : index
    %c1 = arith.constant 1 : index
    %c0_4 = arith.constant 0 : index
    %c0_5 = arith.constant 0 : index
    %2 = vector.load %arg1[%c0_3, %c1, %c0_4, %c0_5] : memref<1x4x8x128xf32, #tpu.memory_space<vmem>>, vector<1x1x8x128xf32>
    %3 = vector.shape_cast %2 : vector<1x1x8x128xf32> to vector<8x128xf32>
    %c0_6 = arith.constant 0 : index
    %c2 = arith.constant 2 : index
    %c0_7 = arith.constant 0 : index
    %c0_8 = arith.constant 0 : index
    %4 = vector.load %arg1[%c0_6, %c2, %c0_7, %c0_8] : memref<1x4x8x128xf32, #tpu.memory_space<vmem>>, vector<1x1x8x128xf32>
    %5 = vector.shape_cast %4 : vector<1x1x8x128xf32> to vector<8x128xf32>
    %c0_9 = arith.constant 0 : index
    %c3 = arith.constant 3 : index
    %c0_10 = arith.constant 0 : index
    %c0_11 = arith.constant 0 : index
    %6 = vector.load %arg1[%c0_9, %c3, %c0_10, %c0_11] : memref<1x4x8x128xf32, #tpu.memory_space<vmem>>, vector<1x1x8x128xf32>
    %7 = vector.shape_cast %6 : vector<1x1x8x128xf32> to vector<8x128xf32>
    %c0_12 = arith.constant 0 : index
    %c0_13 = arith.constant 0 : index
    %8 = memref.load %arg2[%c0_12, %c0_13] : memref<4x16xf32, #tpu.memory_space<smem>>
    %9 = vector.broadcast %8 : f32 to vector<8x128xf32>
    %10 = arith.mulf %9, %1 : vector<8x128xf32>
    %c1_14 = arith.constant 1 : index
    %c0_15 = arith.constant 0 : index
    %11 = memref.load %arg2[%c1_14, %c0_15] : memref<4x16xf32, #tpu.memory_space<smem>>
    %12 = vector.broadcast %11 : f32 to vector<8x128xf32>
    %13 = arith.mulf %12, %3 : vector<8x128xf32>
    %14 = arith.addf %10, %13 : vector<8x128xf32>
    %c2_16 = arith.constant 2 : index
    %c0_17 = arith.constant 0 : index
    %15 = memref.load %arg2[%c2_16, %c0_17] : memref<4x16xf32, #tpu.memory_space<smem>>
    %16 = vector.broadcast %15 : f32 to vector<8x128xf32>
    %17 = arith.mulf %16, %5 : vector<8x128xf32>
    %18 = arith.addf %14, %17 : vector<8x128xf32>
    %c3_18 = arith.constant 3 : index
    %c0_19 = arith.constant 0 : index
    %19 = memref.load %arg2[%c3_18, %c0_19] : memref<4x16xf32, #tpu.memory_space<smem>>
    %20 = vector.broadcast %19 : f32 to vector<8x128xf32>
    %21 = arith.mulf %20, %7 : vector<8x128xf32>
    %22 = arith.addf %18, %21 : vector<8x128xf32>
    %c0_20 = arith.constant 0 : index
    %23 = memref.load %arg3[%c0_20] : memref<16xf32, #tpu.memory_space<smem>>
    %24 = vector.broadcast %23 : f32 to vector<8x128xf32>
    %25 = arith.addf %22, %24 : vector<8x128xf32>
    %cst = arith.constant 0.000000e+00 : f32
    %26 = vector.broadcast %cst : f32 to vector<8x128xf32>
    %27 = arith.maximumf %25, %26 : vector<8x128xf32>
    %c0_21 = arith.constant 0 : index
    %c1_22 = arith.constant 1 : index
    %28 = memref.load %arg2[%c0_21, %c1_22] : memref<4x16xf32, #tpu.memory_space<smem>>
    %29 = vector.broadcast %28 : f32 to vector<8x128xf32>
    %30 = arith.mulf %29, %1 : vector<8x128xf32>
    %c1_23 = arith.constant 1 : index
    %c1_24 = arith.constant 1 : index
    %31 = memref.load %arg2[%c1_23, %c1_24] : memref<4x16xf32, #tpu.memory_space<smem>>
    %32 = vector.broadcast %31 : f32 to vector<8x128xf32>
    %33 = arith.mulf %32, %3 : vector<8x128xf32>
    %34 = arith.addf %30, %33 : vector<8x128xf32>
    %c2_25 = arith.constant 2 : index
    %c1_26 = arith.constant 1 : index
    %35 = memref.load %arg2[%c2_25, %c1_26] : memref<4x16xf32, #tpu.memory_space<smem>>
    %36 = vector.broadcast %35 : f32 to vector<8x128xf32>
    %37 = arith.mulf %36, %5 : vector<8x128xf32>
    %38 = arith.addf %34, %37 : vector<8x128xf32>
    %c3_27 = arith.constant 3 : index
    %c1_28 = arith.constant 1 : index
    %39 = memref.load %arg2[%c3_27, %c1_28] : memref<4x16xf32, #tpu.memory_space<smem>>
    %40 = vector.broadcast %39 : f32 to vector<8x128xf32>
    %41 = arith.mulf %40, %7 : vector<8x128xf32>
    %42 = arith.addf %38, %41 : vector<8x128xf32>
    %c1_29 = arith.constant 1 : index
    %43 = memref.load %arg3[%c1_29] : memref<16xf32, #tpu.memory_space<smem>>
    %44 = vector.broadcast %43 : f32 to vector<8x128xf32>
    %45 = arith.addf %42, %44 : vector<8x128xf32>
    %cst_30 = arith.constant 0.000000e+00 : f32
    %46 = vector.broadcast %cst_30 : f32 to vector<8x128xf32>
    %47 = arith.maximumf %45, %46 : vector<8x128xf32>
    %c0_31 = arith.constant 0 : index
    %c2_32 = arith.constant 2 : index
    %48 = memref.load %arg2[%c0_31, %c2_32] : memref<4x16xf32, #tpu.memory_space<smem>>
    %49 = vector.broadcast %48 : f32 to vector<8x128xf32>
    %50 = arith.mulf %49, %1 : vector<8x128xf32>
    %c1_33 = arith.constant 1 : index
    %c2_34 = arith.constant 2 : index
    %51 = memref.load %arg2[%c1_33, %c2_34] : memref<4x16xf32, #tpu.memory_space<smem>>
    %52 = vector.broadcast %51 : f32 to vector<8x128xf32>
    %53 = arith.mulf %52, %3 : vector<8x128xf32>
    %54 = arith.addf %50, %53 : vector<8x128xf32>
    %c2_35 = arith.constant 2 : index
    %c2_36 = arith.constant 2 : index
    %55 = memref.load %arg2[%c2_35, %c2_36] : memref<4x16xf32, #tpu.memory_space<smem>>
    %56 = vector.broadcast %55 : f32 to vector<8x128xf32>
    %57 = arith.mulf %56, %5 : vector<8x128xf32>
    %58 = arith.addf %54, %57 : vector<8x128xf32>
    %c3_37 = arith.constant 3 : index
    %c2_38 = arith.constant 2 : index
    %59 = memref.load %arg2[%c3_37, %c2_38] : memref<4x16xf32, #tpu.memory_space<smem>>
    %60 = vector.broadcast %59 : f32 to vector<8x128xf32>
    %61 = arith.mulf %60, %7 : vector<8x128xf32>
    %62 = arith.addf %58, %61 : vector<8x128xf32>
    %c2_39 = arith.constant 2 : index
    %63 = memref.load %arg3[%c2_39] : memref<16xf32, #tpu.memory_space<smem>>
    %64 = vector.broadcast %63 : f32 to vector<8x128xf32>
    %65 = arith.addf %62, %64 : vector<8x128xf32>
    %cst_40 = arith.constant 0.000000e+00 : f32
    %66 = vector.broadcast %cst_40 : f32 to vector<8x128xf32>
    %67 = arith.maximumf %65, %66 : vector<8x128xf32>
    %c0_41 = arith.constant 0 : index
    %c3_42 = arith.constant 3 : index
    %68 = memref.load %arg2[%c0_41, %c3_42] : memref<4x16xf32, #tpu.memory_space<smem>>
    %69 = vector.broadcast %68 : f32 to vector<8x128xf32>
    %70 = arith.mulf %69, %1 : vector<8x128xf32>
    %c1_43 = arith.constant 1 : index
    %c3_44 = arith.constant 3 : index
    %71 = memref.load %arg2[%c1_43, %c3_44] : memref<4x16xf32, #tpu.memory_space<smem>>
    %72 = vector.broadcast %71 : f32 to vector<8x128xf32>
    %73 = arith.mulf %72, %3 : vector<8x128xf32>
    %74 = arith.addf %70, %73 : vector<8x128xf32>
    %c2_45 = arith.constant 2 : index
    %c3_46 = arith.constant 3 : index
    %75 = memref.load %arg2[%c2_45, %c3_46] : memref<4x16xf32, #tpu.memory_space<smem>>
    %76 = vector.broadcast %75 : f32 to vector<8x128xf32>
    %77 = arith.mulf %76, %5 : vector<8x128xf32>
    %78 = arith.addf %74, %77 : vector<8x128xf32>
    %c3_47 = arith.constant 3 : index
    %c3_48 = arith.constant 3 : index
    %79 = memref.load %arg2[%c3_47, %c3_48] : memref<4x16xf32, #tpu.memory_space<smem>>
    %80 = vector.broadcast %79 : f32 to vector<8x128xf32>
    %81 = arith.mulf %80, %7 : vector<8x128xf32>
    %82 = arith.addf %78, %81 : vector<8x128xf32>
    %c3_49 = arith.constant 3 : index
    %83 = memref.load %arg3[%c3_49] : memref<16xf32, #tpu.memory_space<smem>>
    %84 = vector.broadcast %83 : f32 to vector<8x128xf32>
    %85 = arith.addf %82, %84 : vector<8x128xf32>
    %cst_50 = arith.constant 0.000000e+00 : f32
    %86 = vector.broadcast %cst_50 : f32 to vector<8x128xf32>
    %87 = arith.maximumf %85, %86 : vector<8x128xf32>
    %c0_51 = arith.constant 0 : index
    %c4 = arith.constant 4 : index
    %88 = memref.load %arg2[%c0_51, %c4] : memref<4x16xf32, #tpu.memory_space<smem>>
    %89 = vector.broadcast %88 : f32 to vector<8x128xf32>
    %90 = arith.mulf %89, %1 : vector<8x128xf32>
    %c1_52 = arith.constant 1 : index
    %c4_53 = arith.constant 4 : index
    %91 = memref.load %arg2[%c1_52, %c4_53] : memref<4x16xf32, #tpu.memory_space<smem>>
    %92 = vector.broadcast %91 : f32 to vector<8x128xf32>
    %93 = arith.mulf %92, %3 : vector<8x128xf32>
    %94 = arith.addf %90, %93 : vector<8x128xf32>
    %c2_54 = arith.constant 2 : index
    %c4_55 = arith.constant 4 : index
    %95 = memref.load %arg2[%c2_54, %c4_55] : memref<4x16xf32, #tpu.memory_space<smem>>
    %96 = vector.broadcast %95 : f32 to vector<8x128xf32>
    %97 = arith.mulf %96, %5 : vector<8x128xf32>
    %98 = arith.addf %94, %97 : vector<8x128xf32>
    %c3_56 = arith.constant 3 : index
    %c4_57 = arith.constant 4 : index
    %99 = memref.load %arg2[%c3_56, %c4_57] : memref<4x16xf32, #tpu.memory_space<smem>>
    %100 = vector.broadcast %99 : f32 to vector<8x128xf32>
    %101 = arith.mulf %100, %7 : vector<8x128xf32>
    %102 = arith.addf %98, %101 : vector<8x128xf32>
    %c4_58 = arith.constant 4 : index
    %103 = memref.load %arg3[%c4_58] : memref<16xf32, #tpu.memory_space<smem>>
    %104 = vector.broadcast %103 : f32 to vector<8x128xf32>
    %105 = arith.addf %102, %104 : vector<8x128xf32>
    %cst_59 = arith.constant 0.000000e+00 : f32
    %106 = vector.broadcast %cst_59 : f32 to vector<8x128xf32>
    %107 = arith.maximumf %105, %106 : vector<8x128xf32>
    %c0_60 = arith.constant 0 : index
    %c5 = arith.constant 5 : index
    %108 = memref.load %arg2[%c0_60, %c5] : memref<4x16xf32, #tpu.memory_space<smem>>
    %109 = vector.broadcast %108 : f32 to vector<8x128xf32>
    %110 = arith.mulf %109, %1 : vector<8x128xf32>
    %c1_61 = arith.constant 1 : index
    %c5_62 = arith.constant 5 : index
    %111 = memref.load %arg2[%c1_61, %c5_62] : memref<4x16xf32, #tpu.memory_space<smem>>
    %112 = vector.broadcast %111 : f32 to vector<8x128xf32>
    %113 = arith.mulf %112, %3 : vector<8x128xf32>
    %114 = arith.addf %110, %113 : vector<8x128xf32>
    %c2_63 = arith.constant 2 : index
    %c5_64 = arith.constant 5 : index
    %115 = memref.load %arg2[%c2_63, %c5_64] : memref<4x16xf32, #tpu.memory_space<smem>>
    %116 = vector.broadcast %115 : f32 to vector<8x128xf32>
    %117 = arith.mulf %116, %5 : vector<8x128xf32>
    %118 = arith.addf %114, %117 : vector<8x128xf32>
    %c3_65 = arith.constant 3 : index
    %c5_66 = arith.constant 5 : index
    %119 = memref.load %arg2[%c3_65, %c5_66] : memref<4x16xf32, #tpu.memory_space<smem>>
    %120 = vector.broadcast %119 : f32 to vector<8x128xf32>
    %121 = arith.mulf %120, %7 : vector<8x128xf32>
    %122 = arith.addf %118, %121 : vector<8x128xf32>
    %c5_67 = arith.constant 5 : index
    %123 = memref.load %arg3[%c5_67] : memref<16xf32, #tpu.memory_space<smem>>
    %124 = vector.broadcast %123 : f32 to vector<8x128xf32>
    %125 = arith.addf %122, %124 : vector<8x128xf32>
    %cst_68 = arith.constant 0.000000e+00 : f32
    %126 = vector.broadcast %cst_68 : f32 to vector<8x128xf32>
    %127 = arith.maximumf %125, %126 : vector<8x128xf32>
    %c0_69 = arith.constant 0 : index
    %c6 = arith.constant 6 : index
    %128 = memref.load %arg2[%c0_69, %c6] : memref<4x16xf32, #tpu.memory_space<smem>>
    %129 = vector.broadcast %128 : f32 to vector<8x128xf32>
    %130 = arith.mulf %129, %1 : vector<8x128xf32>
    %c1_70 = arith.constant 1 : index
    %c6_71 = arith.constant 6 : index
    %131 = memref.load %arg2[%c1_70, %c6_71] : memref<4x16xf32, #tpu.memory_space<smem>>
    %132 = vector.broadcast %131 : f32 to vector<8x128xf32>
    %133 = arith.mulf %132, %3 : vector<8x128xf32>
    %134 = arith.addf %130, %133 : vector<8x128xf32>
    %c2_72 = arith.constant 2 : index
    %c6_73 = arith.constant 6 : index
    %135 = memref.load %arg2[%c2_72, %c6_73] : memref<4x16xf32, #tpu.memory_space<smem>>
    %136 = vector.broadcast %135 : f32 to vector<8x128xf32>
    %137 = arith.mulf %136, %5 : vector<8x128xf32>
    %138 = arith.addf %134, %137 : vector<8x128xf32>
    %c3_74 = arith.constant 3 : index
    %c6_75 = arith.constant 6 : index
    %139 = memref.load %arg2[%c3_74, %c6_75] : memref<4x16xf32, #tpu.memory_space<smem>>
    %140 = vector.broadcast %139 : f32 to vector<8x128xf32>
    %141 = arith.mulf %140, %7 : vector<8x128xf32>
    %142 = arith.addf %138, %141 : vector<8x128xf32>
    %c6_76 = arith.constant 6 : index
    %143 = memref.load %arg3[%c6_76] : memref<16xf32, #tpu.memory_space<smem>>
    %144 = vector.broadcast %143 : f32 to vector<8x128xf32>
    %145 = arith.addf %142, %144 : vector<8x128xf32>
    %cst_77 = arith.constant 0.000000e+00 : f32
    %146 = vector.broadcast %cst_77 : f32 to vector<8x128xf32>
    %147 = arith.maximumf %145, %146 : vector<8x128xf32>
    %c0_78 = arith.constant 0 : index
    %c7 = arith.constant 7 : index
    %148 = memref.load %arg2[%c0_78, %c7] : memref<4x16xf32, #tpu.memory_space<smem>>
    %149 = vector.broadcast %148 : f32 to vector<8x128xf32>
    %150 = arith.mulf %149, %1 : vector<8x128xf32>
    %c1_79 = arith.constant 1 : index
    %c7_80 = arith.constant 7 : index
    %151 = memref.load %arg2[%c1_79, %c7_80] : memref<4x16xf32, #tpu.memory_space<smem>>
    %152 = vector.broadcast %151 : f32 to vector<8x128xf32>
    %153 = arith.mulf %152, %3 : vector<8x128xf32>
    %154 = arith.addf %150, %153 : vector<8x128xf32>
    %c2_81 = arith.constant 2 : index
    %c7_82 = arith.constant 7 : index
    %155 = memref.load %arg2[%c2_81, %c7_82] : memref<4x16xf32, #tpu.memory_space<smem>>
    %156 = vector.broadcast %155 : f32 to vector<8x128xf32>
    %157 = arith.mulf %156, %5 : vector<8x128xf32>
    %158 = arith.addf %154, %157 : vector<8x128xf32>
    %c3_83 = arith.constant 3 : index
    %c7_84 = arith.constant 7 : index
    %159 = memref.load %arg2[%c3_83, %c7_84] : memref<4x16xf32, #tpu.memory_space<smem>>
    %160 = vector.broadcast %159 : f32 to vector<8x128xf32>
    %161 = arith.mulf %160, %7 : vector<8x128xf32>
    %162 = arith.addf %158, %161 : vector<8x128xf32>
    %c7_85 = arith.constant 7 : index
    %163 = memref.load %arg3[%c7_85] : memref<16xf32, #tpu.memory_space<smem>>
    %164 = vector.broadcast %163 : f32 to vector<8x128xf32>
    %165 = arith.addf %162, %164 : vector<8x128xf32>
    %cst_86 = arith.constant 0.000000e+00 : f32
    %166 = vector.broadcast %cst_86 : f32 to vector<8x128xf32>
    %167 = arith.maximumf %165, %166 : vector<8x128xf32>
    %c0_87 = arith.constant 0 : index
    %c8 = arith.constant 8 : index
    %168 = memref.load %arg2[%c0_87, %c8] : memref<4x16xf32, #tpu.memory_space<smem>>
    %169 = vector.broadcast %168 : f32 to vector<8x128xf32>
    %170 = arith.mulf %169, %1 : vector<8x128xf32>
    %c1_88 = arith.constant 1 : index
    %c8_89 = arith.constant 8 : index
    %171 = memref.load %arg2[%c1_88, %c8_89] : memref<4x16xf32, #tpu.memory_space<smem>>
    %172 = vector.broadcast %171 : f32 to vector<8x128xf32>
    %173 = arith.mulf %172, %3 : vector<8x128xf32>
    %174 = arith.addf %170, %173 : vector<8x128xf32>
    %c2_90 = arith.constant 2 : index
    %c8_91 = arith.constant 8 : index
    %175 = memref.load %arg2[%c2_90, %c8_91] : memref<4x16xf32, #tpu.memory_space<smem>>
    %176 = vector.broadcast %175 : f32 to vector<8x128xf32>
    %177 = arith.mulf %176, %5 : vector<8x128xf32>
    %178 = arith.addf %174, %177 : vector<8x128xf32>
    %c3_92 = arith.constant 3 : index
    %c8_93 = arith.constant 8 : index
    %179 = memref.load %arg2[%c3_92, %c8_93] : memref<4x16xf32, #tpu.memory_space<smem>>
    %180 = vector.broadcast %179 : f32 to vector<8x128xf32>
    %181 = arith.mulf %180, %7 : vector<8x128xf32>
    %182 = arith.addf %178, %181 : vector<8x128xf32>
    %c8_94 = arith.constant 8 : index
    %183 = memref.load %arg3[%c8_94] : memref<16xf32, #tpu.memory_space<smem>>
    %184 = vector.broadcast %183 : f32 to vector<8x128xf32>
    %185 = arith.addf %182, %184 : vector<8x128xf32>
    %cst_95 = arith.constant 0.000000e+00 : f32
    %186 = vector.broadcast %cst_95 : f32 to vector<8x128xf32>
    %187 = arith.maximumf %185, %186 : vector<8x128xf32>
    %c0_96 = arith.constant 0 : index
    %c9 = arith.constant 9 : index
    %188 = memref.load %arg2[%c0_96, %c9] : memref<4x16xf32, #tpu.memory_space<smem>>
    %189 = vector.broadcast %188 : f32 to vector<8x128xf32>
    %190 = arith.mulf %189, %1 : vector<8x128xf32>
    %c1_97 = arith.constant 1 : index
    %c9_98 = arith.constant 9 : index
    %191 = memref.load %arg2[%c1_97, %c9_98] : memref<4x16xf32, #tpu.memory_space<smem>>
    %192 = vector.broadcast %191 : f32 to vector<8x128xf32>
    %193 = arith.mulf %192, %3 : vector<8x128xf32>
    %194 = arith.addf %190, %193 : vector<8x128xf32>
    %c2_99 = arith.constant 2 : index
    %c9_100 = arith.constant 9 : index
    %195 = memref.load %arg2[%c2_99, %c9_100] : memref<4x16xf32, #tpu.memory_space<smem>>
    %196 = vector.broadcast %195 : f32 to vector<8x128xf32>
    %197 = arith.mulf %196, %5 : vector<8x128xf32>
    %198 = arith.addf %194, %197 : vector<8x128xf32>
    %c3_101 = arith.constant 3 : index
    %c9_102 = arith.constant 9 : index
    %199 = memref.load %arg2[%c3_101, %c9_102] : memref<4x16xf32, #tpu.memory_space<smem>>
    %200 = vector.broadcast %199 : f32 to vector<8x128xf32>
    %201 = arith.mulf %200, %7 : vector<8x128xf32>
    %202 = arith.addf %198, %201 : vector<8x128xf32>
    %c9_103 = arith.constant 9 : index
    %203 = memref.load %arg3[%c9_103] : memref<16xf32, #tpu.memory_space<smem>>
    %204 = vector.broadcast %203 : f32 to vector<8x128xf32>
    %205 = arith.addf %202, %204 : vector<8x128xf32>
    %cst_104 = arith.constant 0.000000e+00 : f32
    %206 = vector.broadcast %cst_104 : f32 to vector<8x128xf32>
    %207 = arith.maximumf %205, %206 : vector<8x128xf32>
    %c0_105 = arith.constant 0 : index
    %c10 = arith.constant 10 : index
    %208 = memref.load %arg2[%c0_105, %c10] : memref<4x16xf32, #tpu.memory_space<smem>>
    %209 = vector.broadcast %208 : f32 to vector<8x128xf32>
    %210 = arith.mulf %209, %1 : vector<8x128xf32>
    %c1_106 = arith.constant 1 : index
    %c10_107 = arith.constant 10 : index
    %211 = memref.load %arg2[%c1_106, %c10_107] : memref<4x16xf32, #tpu.memory_space<smem>>
    %212 = vector.broadcast %211 : f32 to vector<8x128xf32>
    %213 = arith.mulf %212, %3 : vector<8x128xf32>
    %214 = arith.addf %210, %213 : vector<8x128xf32>
    %c2_108 = arith.constant 2 : index
    %c10_109 = arith.constant 10 : index
    %215 = memref.load %arg2[%c2_108, %c10_109] : memref<4x16xf32, #tpu.memory_space<smem>>
    %216 = vector.broadcast %215 : f32 to vector<8x128xf32>
    %217 = arith.mulf %216, %5 : vector<8x128xf32>
    %218 = arith.addf %214, %217 : vector<8x128xf32>
    %c3_110 = arith.constant 3 : index
    %c10_111 = arith.constant 10 : index
    %219 = memref.load %arg2[%c3_110, %c10_111] : memref<4x16xf32, #tpu.memory_space<smem>>
    %220 = vector.broadcast %219 : f32 to vector<8x128xf32>
    %221 = arith.mulf %220, %7 : vector<8x128xf32>
    %222 = arith.addf %218, %221 : vector<8x128xf32>
    %c10_112 = arith.constant 10 : index
    %223 = memref.load %arg3[%c10_112] : memref<16xf32, #tpu.memory_space<smem>>
    %224 = vector.broadcast %223 : f32 to vector<8x128xf32>
    %225 = arith.addf %222, %224 : vector<8x128xf32>
    %cst_113 = arith.constant 0.000000e+00 : f32
    %226 = vector.broadcast %cst_113 : f32 to vector<8x128xf32>
    %227 = arith.maximumf %225, %226 : vector<8x128xf32>
    %c0_114 = arith.constant 0 : index
    %c11 = arith.constant 11 : index
    %228 = memref.load %arg2[%c0_114, %c11] : memref<4x16xf32, #tpu.memory_space<smem>>
    %229 = vector.broadcast %228 : f32 to vector<8x128xf32>
    %230 = arith.mulf %229, %1 : vector<8x128xf32>
    %c1_115 = arith.constant 1 : index
    %c11_116 = arith.constant 11 : index
    %231 = memref.load %arg2[%c1_115, %c11_116] : memref<4x16xf32, #tpu.memory_space<smem>>
    %232 = vector.broadcast %231 : f32 to vector<8x128xf32>
    %233 = arith.mulf %232, %3 : vector<8x128xf32>
    %234 = arith.addf %230, %233 : vector<8x128xf32>
    %c2_117 = arith.constant 2 : index
    %c11_118 = arith.constant 11 : index
    %235 = memref.load %arg2[%c2_117, %c11_118] : memref<4x16xf32, #tpu.memory_space<smem>>
    %236 = vector.broadcast %235 : f32 to vector<8x128xf32>
    %237 = arith.mulf %236, %5 : vector<8x128xf32>
    %238 = arith.addf %234, %237 : vector<8x128xf32>
    %c3_119 = arith.constant 3 : index
    %c11_120 = arith.constant 11 : index
    %239 = memref.load %arg2[%c3_119, %c11_120] : memref<4x16xf32, #tpu.memory_space<smem>>
    %240 = vector.broadcast %239 : f32 to vector<8x128xf32>
    %241 = arith.mulf %240, %7 : vector<8x128xf32>
    %242 = arith.addf %238, %241 : vector<8x128xf32>
    %c11_121 = arith.constant 11 : index
    %243 = memref.load %arg3[%c11_121] : memref<16xf32, #tpu.memory_space<smem>>
    %244 = vector.broadcast %243 : f32 to vector<8x128xf32>
    %245 = arith.addf %242, %244 : vector<8x128xf32>
    %cst_122 = arith.constant 0.000000e+00 : f32
    %246 = vector.broadcast %cst_122 : f32 to vector<8x128xf32>
    %247 = arith.maximumf %245, %246 : vector<8x128xf32>
    %c0_123 = arith.constant 0 : index
    %c12 = arith.constant 12 : index
    %248 = memref.load %arg2[%c0_123, %c12] : memref<4x16xf32, #tpu.memory_space<smem>>
    %249 = vector.broadcast %248 : f32 to vector<8x128xf32>
    %250 = arith.mulf %249, %1 : vector<8x128xf32>
    %c1_124 = arith.constant 1 : index
    %c12_125 = arith.constant 12 : index
    %251 = memref.load %arg2[%c1_124, %c12_125] : memref<4x16xf32, #tpu.memory_space<smem>>
    %252 = vector.broadcast %251 : f32 to vector<8x128xf32>
    %253 = arith.mulf %252, %3 : vector<8x128xf32>
    %254 = arith.addf %250, %253 : vector<8x128xf32>
    %c2_126 = arith.constant 2 : index
    %c12_127 = arith.constant 12 : index
    %255 = memref.load %arg2[%c2_126, %c12_127] : memref<4x16xf32, #tpu.memory_space<smem>>
    %256 = vector.broadcast %255 : f32 to vector<8x128xf32>
    %257 = arith.mulf %256, %5 : vector<8x128xf32>
    %258 = arith.addf %254, %257 : vector<8x128xf32>
    %c3_128 = arith.constant 3 : index
    %c12_129 = arith.constant 12 : index
    %259 = memref.load %arg2[%c3_128, %c12_129] : memref<4x16xf32, #tpu.memory_space<smem>>
    %260 = vector.broadcast %259 : f32 to vector<8x128xf32>
    %261 = arith.mulf %260, %7 : vector<8x128xf32>
    %262 = arith.addf %258, %261 : vector<8x128xf32>
    %c12_130 = arith.constant 12 : index
    %263 = memref.load %arg3[%c12_130] : memref<16xf32, #tpu.memory_space<smem>>
    %264 = vector.broadcast %263 : f32 to vector<8x128xf32>
    %265 = arith.addf %262, %264 : vector<8x128xf32>
    %cst_131 = arith.constant 0.000000e+00 : f32
    %266 = vector.broadcast %cst_131 : f32 to vector<8x128xf32>
    %267 = arith.maximumf %265, %266 : vector<8x128xf32>
    %c0_132 = arith.constant 0 : index
    %c13 = arith.constant 13 : index
    %268 = memref.load %arg2[%c0_132, %c13] : memref<4x16xf32, #tpu.memory_space<smem>>
    %269 = vector.broadcast %268 : f32 to vector<8x128xf32>
    %270 = arith.mulf %269, %1 : vector<8x128xf32>
    %c1_133 = arith.constant 1 : index
    %c13_134 = arith.constant 13 : index
    %271 = memref.load %arg2[%c1_133, %c13_134] : memref<4x16xf32, #tpu.memory_space<smem>>
    %272 = vector.broadcast %271 : f32 to vector<8x128xf32>
    %273 = arith.mulf %272, %3 : vector<8x128xf32>
    %274 = arith.addf %270, %273 : vector<8x128xf32>
    %c2_135 = arith.constant 2 : index
    %c13_136 = arith.constant 13 : index
    %275 = memref.load %arg2[%c2_135, %c13_136] : memref<4x16xf32, #tpu.memory_space<smem>>
    %276 = vector.broadcast %275 : f32 to vector<8x128xf32>
    %277 = arith.mulf %276, %5 : vector<8x128xf32>
    %278 = arith.addf %274, %277 : vector<8x128xf32>
    %c3_137 = arith.constant 3 : index
    %c13_138 = arith.constant 13 : index
    %279 = memref.load %arg2[%c3_137, %c13_138] : memref<4x16xf32, #tpu.memory_space<smem>>
    %280 = vector.broadcast %279 : f32 to vector<8x128xf32>
    %281 = arith.mulf %280, %7 : vector<8x128xf32>
    %282 = arith.addf %278, %281 : vector<8x128xf32>
    %c13_139 = arith.constant 13 : index
    %283 = memref.load %arg3[%c13_139] : memref<16xf32, #tpu.memory_space<smem>>
    %284 = vector.broadcast %283 : f32 to vector<8x128xf32>
    %285 = arith.addf %282, %284 : vector<8x128xf32>
    %cst_140 = arith.constant 0.000000e+00 : f32
    %286 = vector.broadcast %cst_140 : f32 to vector<8x128xf32>
    %287 = arith.maximumf %285, %286 : vector<8x128xf32>
    %c0_141 = arith.constant 0 : index
    %c14 = arith.constant 14 : index
    %288 = memref.load %arg2[%c0_141, %c14] : memref<4x16xf32, #tpu.memory_space<smem>>
    %289 = vector.broadcast %288 : f32 to vector<8x128xf32>
    %290 = arith.mulf %289, %1 : vector<8x128xf32>
    %c1_142 = arith.constant 1 : index
    %c14_143 = arith.constant 14 : index
    %291 = memref.load %arg2[%c1_142, %c14_143] : memref<4x16xf32, #tpu.memory_space<smem>>
    %292 = vector.broadcast %291 : f32 to vector<8x128xf32>
    %293 = arith.mulf %292, %3 : vector<8x128xf32>
    %294 = arith.addf %290, %293 : vector<8x128xf32>
    %c2_144 = arith.constant 2 : index
    %c14_145 = arith.constant 14 : index
    %295 = memref.load %arg2[%c2_144, %c14_145] : memref<4x16xf32, #tpu.memory_space<smem>>
    %296 = vector.broadcast %295 : f32 to vector<8x128xf32>
    %297 = arith.mulf %296, %5 : vector<8x128xf32>
    %298 = arith.addf %294, %297 : vector<8x128xf32>
    %c3_146 = arith.constant 3 : index
    %c14_147 = arith.constant 14 : index
    %299 = memref.load %arg2[%c3_146, %c14_147] : memref<4x16xf32, #tpu.memory_space<smem>>
    %300 = vector.broadcast %299 : f32 to vector<8x128xf32>
    %301 = arith.mulf %300, %7 : vector<8x128xf32>
    %302 = arith.addf %298, %301 : vector<8x128xf32>
    %c14_148 = arith.constant 14 : index
    %303 = memref.load %arg3[%c14_148] : memref<16xf32, #tpu.memory_space<smem>>
    %304 = vector.broadcast %303 : f32 to vector<8x128xf32>
    %305 = arith.addf %302, %304 : vector<8x128xf32>
    %cst_149 = arith.constant 0.000000e+00 : f32
    %306 = vector.broadcast %cst_149 : f32 to vector<8x128xf32>
    %307 = arith.maximumf %305, %306 : vector<8x128xf32>
    %c0_150 = arith.constant 0 : index
    %c15 = arith.constant 15 : index
    %308 = memref.load %arg2[%c0_150, %c15] : memref<4x16xf32, #tpu.memory_space<smem>>
    %309 = vector.broadcast %308 : f32 to vector<8x128xf32>
    %310 = arith.mulf %309, %1 : vector<8x128xf32>
    %c1_151 = arith.constant 1 : index
    %c15_152 = arith.constant 15 : index
    %311 = memref.load %arg2[%c1_151, %c15_152] : memref<4x16xf32, #tpu.memory_space<smem>>
    %312 = vector.broadcast %311 : f32 to vector<8x128xf32>
    %313 = arith.mulf %312, %3 : vector<8x128xf32>
    %314 = arith.addf %310, %313 : vector<8x128xf32>
    %c2_153 = arith.constant 2 : index
    %c15_154 = arith.constant 15 : index
    %315 = memref.load %arg2[%c2_153, %c15_154] : memref<4x16xf32, #tpu.memory_space<smem>>
    %316 = vector.broadcast %315 : f32 to vector<8x128xf32>
    %317 = arith.mulf %316, %5 : vector<8x128xf32>
    %318 = arith.addf %314, %317 : vector<8x128xf32>
    %c3_155 = arith.constant 3 : index
    %c15_156 = arith.constant 15 : index
    %319 = memref.load %arg2[%c3_155, %c15_156] : memref<4x16xf32, #tpu.memory_space<smem>>
    %320 = vector.broadcast %319 : f32 to vector<8x128xf32>
    %321 = arith.mulf %320, %7 : vector<8x128xf32>
    %322 = arith.addf %318, %321 : vector<8x128xf32>
    %c15_157 = arith.constant 15 : index
    %323 = memref.load %arg3[%c15_157] : memref<16xf32, #tpu.memory_space<smem>>
    %324 = vector.broadcast %323 : f32 to vector<8x128xf32>
    %325 = arith.addf %322, %324 : vector<8x128xf32>
    %cst_158 = arith.constant 0.000000e+00 : f32
    %326 = vector.broadcast %cst_158 : f32 to vector<8x128xf32>
    %327 = arith.maximumf %325, %326 : vector<8x128xf32>
    %c0_159 = arith.constant 0 : index
    %c0_160 = arith.constant 0 : index
    %328 = memref.load %arg4[%c0_159, %c0_160] : memref<16x2xf32, #tpu.memory_space<smem>>
    %329 = vector.broadcast %328 : f32 to vector<8x128xf32>
    %330 = arith.mulf %329, %27 : vector<8x128xf32>
    %c1_161 = arith.constant 1 : index
    %c0_162 = arith.constant 0 : index
    %331 = memref.load %arg4[%c1_161, %c0_162] : memref<16x2xf32, #tpu.memory_space<smem>>
    %332 = vector.broadcast %331 : f32 to vector<8x128xf32>
    %333 = arith.mulf %332, %47 : vector<8x128xf32>
    %334 = arith.addf %330, %333 : vector<8x128xf32>
    %c2_163 = arith.constant 2 : index
    %c0_164 = arith.constant 0 : index
    %335 = memref.load %arg4[%c2_163, %c0_164] : memref<16x2xf32, #tpu.memory_space<smem>>
    %336 = vector.broadcast %335 : f32 to vector<8x128xf32>
    %337 = arith.mulf %336, %67 : vector<8x128xf32>
    %338 = arith.addf %334, %337 : vector<8x128xf32>
    %c3_165 = arith.constant 3 : index
    %c0_166 = arith.constant 0 : index
    %339 = memref.load %arg4[%c3_165, %c0_166] : memref<16x2xf32, #tpu.memory_space<smem>>
    %340 = vector.broadcast %339 : f32 to vector<8x128xf32>
    %341 = arith.mulf %340, %87 : vector<8x128xf32>
    %342 = arith.addf %338, %341 : vector<8x128xf32>
    %c4_167 = arith.constant 4 : index
    %c0_168 = arith.constant 0 : index
    %343 = memref.load %arg4[%c4_167, %c0_168] : memref<16x2xf32, #tpu.memory_space<smem>>
    %344 = vector.broadcast %343 : f32 to vector<8x128xf32>
    %345 = arith.mulf %344, %107 : vector<8x128xf32>
    %346 = arith.addf %342, %345 : vector<8x128xf32>
    %c5_169 = arith.constant 5 : index
    %c0_170 = arith.constant 0 : index
    %347 = memref.load %arg4[%c5_169, %c0_170] : memref<16x2xf32, #tpu.memory_space<smem>>
    %348 = vector.broadcast %347 : f32 to vector<8x128xf32>
    %349 = arith.mulf %348, %127 : vector<8x128xf32>
    %350 = arith.addf %346, %349 : vector<8x128xf32>
    %c6_171 = arith.constant 6 : index
    %c0_172 = arith.constant 0 : index
    %351 = memref.load %arg4[%c6_171, %c0_172] : memref<16x2xf32, #tpu.memory_space<smem>>
    %352 = vector.broadcast %351 : f32 to vector<8x128xf32>
    %353 = arith.mulf %352, %147 : vector<8x128xf32>
    %354 = arith.addf %350, %353 : vector<8x128xf32>
    %c7_173 = arith.constant 7 : index
    %c0_174 = arith.constant 0 : index
    %355 = memref.load %arg4[%c7_173, %c0_174] : memref<16x2xf32, #tpu.memory_space<smem>>
    %356 = vector.broadcast %355 : f32 to vector<8x128xf32>
    %357 = arith.mulf %356, %167 : vector<8x128xf32>
    %358 = arith.addf %354, %357 : vector<8x128xf32>
    %c8_175 = arith.constant 8 : index
    %c0_176 = arith.constant 0 : index
    %359 = memref.load %arg4[%c8_175, %c0_176] : memref<16x2xf32, #tpu.memory_space<smem>>
    %360 = vector.broadcast %359 : f32 to vector<8x128xf32>
    %361 = arith.mulf %360, %187 : vector<8x128xf32>
    %362 = arith.addf %358, %361 : vector<8x128xf32>
    %c9_177 = arith.constant 9 : index
    %c0_178 = arith.constant 0 : index
    %363 = memref.load %arg4[%c9_177, %c0_178] : memref<16x2xf32, #tpu.memory_space<smem>>
    %364 = vector.broadcast %363 : f32 to vector<8x128xf32>
    %365 = arith.mulf %364, %207 : vector<8x128xf32>
    %366 = arith.addf %362, %365 : vector<8x128xf32>
    %c10_179 = arith.constant 10 : index
    %c0_180 = arith.constant 0 : index
    %367 = memref.load %arg4[%c10_179, %c0_180] : memref<16x2xf32, #tpu.memory_space<smem>>
    %368 = vector.broadcast %367 : f32 to vector<8x128xf32>
    %369 = arith.mulf %368, %227 : vector<8x128xf32>
    %370 = arith.addf %366, %369 : vector<8x128xf32>
    %c11_181 = arith.constant 11 : index
    %c0_182 = arith.constant 0 : index
    %371 = memref.load %arg4[%c11_181, %c0_182] : memref<16x2xf32, #tpu.memory_space<smem>>
    %372 = vector.broadcast %371 : f32 to vector<8x128xf32>
    %373 = arith.mulf %372, %247 : vector<8x128xf32>
    %374 = arith.addf %370, %373 : vector<8x128xf32>
    %c12_183 = arith.constant 12 : index
    %c0_184 = arith.constant 0 : index
    %375 = memref.load %arg4[%c12_183, %c0_184] : memref<16x2xf32, #tpu.memory_space<smem>>
    %376 = vector.broadcast %375 : f32 to vector<8x128xf32>
    %377 = arith.mulf %376, %267 : vector<8x128xf32>
    %378 = arith.addf %374, %377 : vector<8x128xf32>
    %c13_185 = arith.constant 13 : index
    %c0_186 = arith.constant 0 : index
    %379 = memref.load %arg4[%c13_185, %c0_186] : memref<16x2xf32, #tpu.memory_space<smem>>
    %380 = vector.broadcast %379 : f32 to vector<8x128xf32>
    %381 = arith.mulf %380, %287 : vector<8x128xf32>
    %382 = arith.addf %378, %381 : vector<8x128xf32>
    %c14_187 = arith.constant 14 : index
    %c0_188 = arith.constant 0 : index
    %383 = memref.load %arg4[%c14_187, %c0_188] : memref<16x2xf32, #tpu.memory_space<smem>>
    %384 = vector.broadcast %383 : f32 to vector<8x128xf32>
    %385 = arith.mulf %384, %307 : vector<8x128xf32>
    %386 = arith.addf %382, %385 : vector<8x128xf32>
    %c15_189 = arith.constant 15 : index
    %c0_190 = arith.constant 0 : index
    %387 = memref.load %arg4[%c15_189, %c0_190] : memref<16x2xf32, #tpu.memory_space<smem>>
    %388 = vector.broadcast %387 : f32 to vector<8x128xf32>
    %389 = arith.mulf %388, %327 : vector<8x128xf32>
    %390 = arith.addf %386, %389 : vector<8x128xf32>
    %c0_191 = arith.constant 0 : index
    %391 = memref.load %arg5[%c0_191] : memref<2xf32, #tpu.memory_space<smem>>
    %392 = vector.broadcast %391 : f32 to vector<8x128xf32>
    %393 = arith.addf %390, %392 : vector<8x128xf32>
    %c0_192 = arith.constant 0 : index
    %c1_193 = arith.constant 1 : index
    %394 = memref.load %arg4[%c0_192, %c1_193] : memref<16x2xf32, #tpu.memory_space<smem>>
    %395 = vector.broadcast %394 : f32 to vector<8x128xf32>
    %396 = arith.mulf %395, %27 : vector<8x128xf32>
    %c1_194 = arith.constant 1 : index
    %c1_195 = arith.constant 1 : index
    %397 = memref.load %arg4[%c1_194, %c1_195] : memref<16x2xf32, #tpu.memory_space<smem>>
    %398 = vector.broadcast %397 : f32 to vector<8x128xf32>
    %399 = arith.mulf %398, %47 : vector<8x128xf32>
    %400 = arith.addf %396, %399 : vector<8x128xf32>
    %c2_196 = arith.constant 2 : index
    %c1_197 = arith.constant 1 : index
    %401 = memref.load %arg4[%c2_196, %c1_197] : memref<16x2xf32, #tpu.memory_space<smem>>
    %402 = vector.broadcast %401 : f32 to vector<8x128xf32>
    %403 = arith.mulf %402, %67 : vector<8x128xf32>
    %404 = arith.addf %400, %403 : vector<8x128xf32>
    %c3_198 = arith.constant 3 : index
    %c1_199 = arith.constant 1 : index
    %405 = memref.load %arg4[%c3_198, %c1_199] : memref<16x2xf32, #tpu.memory_space<smem>>
    %406 = vector.broadcast %405 : f32 to vector<8x128xf32>
    %407 = arith.mulf %406, %87 : vector<8x128xf32>
    %408 = arith.addf %404, %407 : vector<8x128xf32>
    %c4_200 = arith.constant 4 : index
    %c1_201 = arith.constant 1 : index
    %409 = memref.load %arg4[%c4_200, %c1_201] : memref<16x2xf32, #tpu.memory_space<smem>>
    %410 = vector.broadcast %409 : f32 to vector<8x128xf32>
    %411 = arith.mulf %410, %107 : vector<8x128xf32>
    %412 = arith.addf %408, %411 : vector<8x128xf32>
    %c5_202 = arith.constant 5 : index
    %c1_203 = arith.constant 1 : index
    %413 = memref.load %arg4[%c5_202, %c1_203] : memref<16x2xf32, #tpu.memory_space<smem>>
    %414 = vector.broadcast %413 : f32 to vector<8x128xf32>
    %415 = arith.mulf %414, %127 : vector<8x128xf32>
    %416 = arith.addf %412, %415 : vector<8x128xf32>
    %c6_204 = arith.constant 6 : index
    %c1_205 = arith.constant 1 : index
    %417 = memref.load %arg4[%c6_204, %c1_205] : memref<16x2xf32, #tpu.memory_space<smem>>
    %418 = vector.broadcast %417 : f32 to vector<8x128xf32>
    %419 = arith.mulf %418, %147 : vector<8x128xf32>
    %420 = arith.addf %416, %419 : vector<8x128xf32>
    %c7_206 = arith.constant 7 : index
    %c1_207 = arith.constant 1 : index
    %421 = memref.load %arg4[%c7_206, %c1_207] : memref<16x2xf32, #tpu.memory_space<smem>>
    %422 = vector.broadcast %421 : f32 to vector<8x128xf32>
    %423 = arith.mulf %422, %167 : vector<8x128xf32>
    %424 = arith.addf %420, %423 : vector<8x128xf32>
    %c8_208 = arith.constant 8 : index
    %c1_209 = arith.constant 1 : index
    %425 = memref.load %arg4[%c8_208, %c1_209] : memref<16x2xf32, #tpu.memory_space<smem>>
    %426 = vector.broadcast %425 : f32 to vector<8x128xf32>
    %427 = arith.mulf %426, %187 : vector<8x128xf32>
    %428 = arith.addf %424, %427 : vector<8x128xf32>
    %c9_210 = arith.constant 9 : index
    %c1_211 = arith.constant 1 : index
    %429 = memref.load %arg4[%c9_210, %c1_211] : memref<16x2xf32, #tpu.memory_space<smem>>
    %430 = vector.broadcast %429 : f32 to vector<8x128xf32>
    %431 = arith.mulf %430, %207 : vector<8x128xf32>
    %432 = arith.addf %428, %431 : vector<8x128xf32>
    %c10_212 = arith.constant 10 : index
    %c1_213 = arith.constant 1 : index
    %433 = memref.load %arg4[%c10_212, %c1_213] : memref<16x2xf32, #tpu.memory_space<smem>>
    %434 = vector.broadcast %433 : f32 to vector<8x128xf32>
    %435 = arith.mulf %434, %227 : vector<8x128xf32>
    %436 = arith.addf %432, %435 : vector<8x128xf32>
    %c11_214 = arith.constant 11 : index
    %c1_215 = arith.constant 1 : index
    %437 = memref.load %arg4[%c11_214, %c1_215] : memref<16x2xf32, #tpu.memory_space<smem>>
    %438 = vector.broadcast %437 : f32 to vector<8x128xf32>
    %439 = arith.mulf %438, %247 : vector<8x128xf32>
    %440 = arith.addf %436, %439 : vector<8x128xf32>
    %c12_216 = arith.constant 12 : index
    %c1_217 = arith.constant 1 : index
    %441 = memref.load %arg4[%c12_216, %c1_217] : memref<16x2xf32, #tpu.memory_space<smem>>
    %442 = vector.broadcast %441 : f32 to vector<8x128xf32>
    %443 = arith.mulf %442, %267 : vector<8x128xf32>
    %444 = arith.addf %440, %443 : vector<8x128xf32>
    %c13_218 = arith.constant 13 : index
    %c1_219 = arith.constant 1 : index
    %445 = memref.load %arg4[%c13_218, %c1_219] : memref<16x2xf32, #tpu.memory_space<smem>>
    %446 = vector.broadcast %445 : f32 to vector<8x128xf32>
    %447 = arith.mulf %446, %287 : vector<8x128xf32>
    %448 = arith.addf %444, %447 : vector<8x128xf32>
    %c14_220 = arith.constant 14 : index
    %c1_221 = arith.constant 1 : index
    %449 = memref.load %arg4[%c14_220, %c1_221] : memref<16x2xf32, #tpu.memory_space<smem>>
    %450 = vector.broadcast %449 : f32 to vector<8x128xf32>
    %451 = arith.mulf %450, %307 : vector<8x128xf32>
    %452 = arith.addf %448, %451 : vector<8x128xf32>
    %c15_222 = arith.constant 15 : index
    %c1_223 = arith.constant 1 : index
    %453 = memref.load %arg4[%c15_222, %c1_223] : memref<16x2xf32, #tpu.memory_space<smem>>
    %454 = vector.broadcast %453 : f32 to vector<8x128xf32>
    %455 = arith.mulf %454, %327 : vector<8x128xf32>
    %456 = arith.addf %452, %455 : vector<8x128xf32>
    %c1_224 = arith.constant 1 : index
    %457 = memref.load %arg5[%c1_224] : memref<2xf32, #tpu.memory_space<smem>>
    %458 = vector.broadcast %457 : f32 to vector<8x128xf32>
    %459 = arith.addf %456, %458 : vector<8x128xf32>
    %460 = arith.maximumf %393, %459 : vector<8x128xf32>
    %461 = arith.subf %393, %460 : vector<8x128xf32>
    %462 = math.exp %461 : vector<8x128xf32>
    %463 = arith.subf %459, %460 : vector<8x128xf32>
    %464 = math.exp %463 : vector<8x128xf32>
    %465 = arith.addf %462, %464 : vector<8x128xf32>
    %cst_225 = arith.constant 1.000000e+00 : f32
    %466 = vector.broadcast %cst_225 : f32 to vector<8x128xf32>
    %467 = arith.divf %466, %465 : vector<8x128xf32>
    %468 = arith.mulf %462, %467 : vector<8x128xf32>
    %c0_226 = arith.constant 0 : index
    %c0_227 = arith.constant 0 : index
    %c0_228 = arith.constant 0 : index
    %c0_229 = arith.constant 0 : index
    %469 = vector.load %arg6[%c0_226, %c0_227, %c0_228, %c0_229] : memref<1x2x8x128xf32, #tpu.memory_space<vmem>>, vector<1x1x8x128xf32>
    %470 = vector.shape_cast %469 : vector<1x1x8x128xf32> to vector<8x128xf32>
    %471 = vector.shape_cast %468 : vector<8x128xf32> to vector<1x1x8x128xf32>
    tpu.vector_store %arg6[%c0_226, %c0_227, %c0_228, %c0_229], %471 {strides = array<i32>} : memref<1x2x8x128xf32, #tpu.memory_space<vmem>>, vector<1x1x8x128xf32>,
    %472 = arith.mulf %464, %467 : vector<8x128xf32>
    %c0_230 = arith.constant 0 : index
    %c1_231 = arith.constant 1 : index
    %c0_232 = arith.constant 0 : index
    %c0_233 = arith.constant 0 : index
    %473 = vector.load %arg6[%c0_230, %c1_231, %c0_232, %c0_233] : memref<1x2x8x128xf32, #tpu.memory_space<vmem>>, vector<1x1x8x128xf32>
    %474 = vector.shape_cast %473 : vector<1x1x8x128xf32> to vector<8x128xf32>
    %475 = vector.shape_cast %472 : vector<8x128xf32> to vector<1x1x8x128xf32>
    tpu.vector_store %arg6[%c0_230, %c1_231, %c0_232, %c0_233], %475 {strides = array<i32>} : memref<1x2x8x128xf32, #tpu.memory_space<vmem>>, vector<1x1x8x128xf32>,
    return
  }
  func.func @transform_0(%arg0: i32) -> (i32, i32, i32, i32) {
    %c0_i32 = arith.constant 0 : i32
    %c0_i32_0 = arith.constant 0 : i32
    %c0_i32_1 = arith.constant 0 : i32
    %c0_i32_2 = arith.constant 0 : i32
    return %arg0, %c0_i32, %c0_i32_0, %c0_i32_1 : i32, i32, i32, i32
  }
  func.func @transform_1(%arg0: i32) -> (i32, i32) {
    %c0_i32 = arith.constant 0 : i32
    %c0_i32_0 = arith.constant 0 : i32
    %c0_i32_1 = arith.constant 0 : i32
    return %c0_i32, %c0_i32_0 : i32, i32
  }
  func.func @transform_2(%arg0: i32) -> i32 {
    %c0_i32 = arith.constant 0 : i32
    %c0_i32_0 = arith.constant 0 : i32
    return %c0_i32 : i32
  }
  func.func @transform_3(%arg0: i32) -> (i32, i32) {
    %c0_i32 = arith.constant 0 : i32
    %c0_i32_0 = arith.constant 0 : i32
    %c0_i32_1 = arith.constant 0 : i32
    return %c0_i32, %c0_i32_0 : i32, i32
  }
  func.func @transform_4(%arg0: i32) -> i32 {
    %c0_i32 = arith.constant 0 : i32
    %c0_i32_0 = arith.constant 0 : i32
    return %c0_i32 : i32
  }
  func.func @transform_5(%arg0: i32) -> (i32, i32, i32, i32) {
    %c0_i32 = arith.constant 0 : i32
    %c0_i32_0 = arith.constant 0 : i32
    %c0_i32_1 = arith.constant 0 : i32
    %c0_i32_2 = arith.constant 0 : i32
    return %arg0, %c0_i32, %c0_i32_0, %c0_i32_1 : i32, i32, i32, i32
  }
}

</mosaic_0001>

<llo_original>
// kernel: tpu_custom_call.1
$region0: #{tpu_custom_call.1}
  #allocation0 [shape = 'u32[]', space=smem, size = 0x4, offset = 0x4, fixed_abs, tag = 'smem constant byte address 0x4 - core index']
  #allocation1 [shape = 'u32[144,128]{1,0:T(1,128)}', space=vmem, size = 0x12000, scoped, tag = 'internal scratch']
  %s0 = inlined_call_operand.hbm [shape: f32[1,4,8,128], index: 0, kind: input, shape index: {}]
  %s1 = inlined_call_operand.vmem [shape: f32[4,16], index: 1, kind: input, shape index: {}]
  %s2 = inlined_call_operand.vmem [shape: f32[16], index: 2, kind: input, shape index: {}]
  %s3 = inlined_call_operand.vmem [shape: f32[16,2], index: 3, kind: input, shape index: {}]
  %s4 = inlined_call_operand.vmem [shape: f32[2], index: 4, kind: input, shape index: {}]
  %s5 = inlined_call_operand.hbm [shape: f32[1,2,8,128], index: 5, kind: output, shape index: {}]
  %s6 = sld [smem:[#allocation0]]
  $region50: #{tpu_custom_call.1} parent=0
    _
  %s8 = ssub.s32 1, %s6
  %s9 = scalar_select 0, %s8, %s6
  $region1: #{tpu_custom_call.1} parent=0
    #allocation2 [shape = 'u8[16384]{0}', space=vmem, size = 0x4000, scoped, tag = 'input window, operand 0, single buffered']
    #allocation3 [shape = 's32[1]{0}', space=sflag, size = 0x4, scoped, tag = 'scoped memory for tpu_custom_call.1']
    #allocation4 [shape = 's32[1]{0}', space=sflag, size = 0x4, scoped, tag = 'scoped memory for tpu_custom_call.1']
    #allocation5 [shape = 's32[1]{0}', space=sflag, size = 0x4, scoped, tag = 'scoped memory for tpu_custom_call.1']
    #allocation6 [shape = 'u8[2048]{0}', space=smem, size = 0x800, scoped, tag = 'input window, operand 1, single buffered']
    #allocation7 [shape = 'u8[512]{0}', space=smem, size = 0x200, scoped, tag = 'input window, operand 2, single buffered']
    #allocation8 [shape = 's32[1]{0}', space=sflag, size = 0x4, scoped, tag = 'scoped memory for tpu_custom_call.1']
    #allocation9 [shape = 'u8[8192]{0}', space=smem, size = 0x2000, scoped, tag = 'input window, operand 3, single buffered']
    #allocation10 [shape = 'u8[512]{0}', space=smem, size = 0x200, scoped, tag = 'input window, operand 4, single buffered']
    #allocation11 [shape = 's32[1]{0}', space=sflag, size = 0x4, scoped, tag = 'scoped memory for tpu_custom_call.1']
    #allocation12 [shape = 'u8[8192]{0}', space=vmem, size = 0x2000, scoped, tag = 'output window, operand 0, single buffered']
    %10 = vsyncpa [#allocation3], 0
    %11 = vsyncpa [#allocation5], 0
    %12 = vsyncpa [#allocation8], 0
    %13 = vsyncpa [#allocation11], 0
    %14 = vsyncpa [#allocation4], 0
    // Predicated region
    $region2: #{tpu_custom_call.1} parent=1 // pred_check
      _
    $region3: #{tpu_custom_call.1} parent=1 // pred_check_branch
      %16 = sbr.rel (0) target = $region5
    $region4: #{tpu_custom_call.1} parent=1 // pred_region
      %s18 = ssub.s32 512, 512
      %19 = vsyncadd [#allocation3], %s18
      %s20 = sshll.u32 [#allocation2], 4
      %s21 = int_to_ptr.vmem [resolvable:$true] %s20
      %26 = dma.hbm_to_vmem [thread:$0]  %s0, 512, %s21, [#allocation3], 128, 128, 8
    $region5: #{tpu_custom_call.1} parent=1 // pred_fallthru
      _
    // Predicated region
    $region6: #{tpu_custom_call.1} parent=1 // pred_check
      _
    $region7: #{tpu_custom_call.1} parent=1 // pred_check_branch
      %28 = sbr.rel (0) target = $region9
    $region8: #{tpu_custom_call.1} parent=1 // pred_region
      %s30 = ssub.s32 64, 64
      %31 = vsyncadd [#allocation5], %s30
      %s33 = sshll.u32 %s1, 4
      %s34 = int_to_ptr.vmem [resolvable:$true] %s33
      %36 = dma.vmem_to_smem %s34, 64, [#allocation6], [#allocation5]
    $region9: #{tpu_custom_call.1} parent=1 // pred_fallthru
      _
    // Predicated region
    $region10: #{tpu_custom_call.1} parent=1 // pred_check
      _
    $region11: #{tpu_custom_call.1} parent=1 // pred_check_branch
      %38 = sbr.rel (0) target = $region13
    $region12: #{tpu_custom_call.1} parent=1 // pred_region
      %s40 = ssub.s32 16, 16
      %41 = vsyncadd [#allocation8], %s40
      %s43 = sshll.u32 %s2, 4
      %s44 = int_to_ptr.vmem [resolvable:$true] %s43
      %46 = dma.vmem_to_smem %s44, 16, [#allocation7], [#allocation8]
    $region13: #{tpu_custom_call.1} parent=1 // pred_fallthru
      _
    // Predicated region
    $region14: #{tpu_custom_call.1} parent=1 // pred_check
      _
    $region15: #{tpu_custom_call.1} parent=1 // pred_check_branch
      %48 = sbr.rel (0) target = $region17
    $region16: #{tpu_custom_call.1} parent=1 // pred_region
      %s50 = ssub.s32 256, 256
      %51 = vsyncadd [#allocation8], %s50
      %s52 = sshll.u32 %s3, 4
      %s53 = int_to_ptr.vmem [resolvable:$true] %s52
      %58 = dma.vmem_to_smem %s53, 256, [#allocation9], [#allocation8], 128, 128, 8
    $region17: #{tpu_custom_call.1} parent=1 // pred_fallthru
      _
    // Predicated region
    $region18: #{tpu_custom_call.1} parent=1 // pred_check
      _
    $region19: #{tpu_custom_call.1} parent=1 // pred_check_branch
      %60 = sbr.rel (0) target = $region21
    $region20: #{tpu_custom_call.1} parent=1 // pred_region
      %s62 = ssub.s32 16, 16
      %63 = vsyncadd [#allocation11], %s62
      %s65 = sshll.u32 %s4, 4
      %s66 = int_to_ptr.vmem [resolvable:$true] %s65
      %68 = dma.vmem_to_smem %s66, 16, [#allocation10], [#allocation11]
    $region21: #{tpu_custom_call.1} parent=1 // pred_fallthru
      _
    // Predicated region
    $region22: #{tpu_custom_call.1} parent=1 // pred_check
      _
    $region23: #{tpu_custom_call.1} parent=1 // pred_check_branch
      %70 = sbr.rel (0) target = $region25
    $region24: #{tpu_custom_call.1} parent=1 // pred_region
      %71 = dma.done [#allocation3], 512
    $region25: #{tpu_custom_call.1} parent=1 // pred_fallthru
      _
    // Predicated region
    $region26: #{tpu_custom_call.1} parent=1 // pred_check
      _
    $region27: #{tpu_custom_call.1} parent=1 // pred_check_branch
      %73 = sbr.rel (0) target = $region29
    $region28: #{tpu_custom_call.1} parent=1 // pred_region
      %74 = dma.done [#allocation5], 64
    $region29: #{tpu_custom_call.1} parent=1 // pred_fallthru
      _
    // Predicated region
    $region30: #{tpu_custom_call.1} parent=1 // pred_check
      _
    $region31: #{tpu_custom_call.1} parent=1 // pred_check_branch
      %76 = sbr.rel (0) target = $region33
    $region32: #{tpu_custom_call.1} parent=1 // pred_region
      %77 = dma.done [#allocation8], 16
    $region33: #{tpu_custom_call.1} parent=1 // pred_fallthru
      _
    // Predicated region
    $region34: #{tpu_custom_call.1} parent=1 // pred_check
      _
    $region35: #{tpu_custom_call.1} parent=1 // pred_check_branch
      %79 = sbr.rel (0) target = $region37
    $region36: #{tpu_custom_call.1} parent=1 // pred_region
      %80 = dma.done [#allocation8], 256
    $region37: #{tpu_custom_call.1} parent=1 // pred_fallthru
      _
    // Predicated region
    $region38: #{tpu_custom_call.1} parent=1 // pred_check
      _
    $region39: #{tpu_custom_call.1} parent=1 // pred_check_branch
      %82 = sbr.rel (0) target = $region41
    $region40: #{tpu_custom_call.1} parent=1 // pred_region
      %83 = dma.done [#allocation11], 16
    $region41: #{tpu_custom_call.1} parent=1 // pred_fallthru
      _
    %84 = sfence
    %v85 = vld [vmem:[#allocation2] sm:$0xff]
    %s86 = scalar_lea.vmem [#allocation2], 8
    %v87 = vld [vmem:[%s86] sm:$0xff]
    %s88 = scalar_lea.vmem [#allocation2], 16
    %v89 = vld [vmem:[%s88] sm:$0xff]
    %s90 = scalar_lea.vmem [#allocation2], 24
    %v91 = vld [vmem:[%s90] sm:$0xff]
    %s92 = sld [smem:[#allocation6]]
    %v93 = vstv %s92
    %v94 = vmul.f32 %v93, %v85
    %s95 = sld [smem:[#allocation6 + $0x80]]
    %v96 = vstv %s95
    %v97 = vmul.f32 %v96, %v87
    %v98 = vadd.f32 %v94, %v97
    %s99 = sld [smem:[#allocation6 + $0x100]]
    %v100 = vstv %s99
    %v101 = vmul.f32 %v100, %v89
    %v102 = vadd.f32 %v98, %v101
    %s103 = sld [smem:[#allocation6 + $0x180]]
    %v104 = vstv %s103
    %v105 = vmul.f32 %v104, %v91
    %v106 = vadd.f32 %v102, %v105
    %s107 = sld [smem:[#allocation7]]
    %v108 = vstv %s107
    %v109 = vadd.f32 %v106, %v108
    %v110 = vmax.f32 %v109, 0.0
    %s111 = sld [smem:[#allocation6 + $0x1]]
    %v112 = vstv %s111
    %v113 = vmul.f32 %v112, %v85
    %s114 = sld [smem:[#allocation6 + $0x81]]
    %v115 = vstv %s114
    %v116 = vmul.f32 %v115, %v87
    %v117 = vadd.f32 %v113, %v116
    %s118 = sld [smem:[#allocation6 + $0x101]]
    %v119 = vstv %s118
    %v120 = vmul.f32 %v119, %v89
    %v121 = vadd.f32 %v117, %v120
    %s122 = sld [smem:[#allocation6 + $0x181]]
    %v123 = vstv %s122
    %v124 = vmul.f32 %v123, %v91
    %v125 = vadd.f32 %v121, %v124
    %s126 = sld [smem:[#allocation7 + $0x1]]
    %v127 = vstv %s126
    %v128 = vadd.f32 %v125, %v127
    %v129 = vmax.f32 %v128, 0.0
    %s130 = sld [smem:[#allocation6 + $0x2]]
    %v131 = vstv %s130
    %v132 = vmul.f32 %v131, %v85
    %s133 = sld [smem:[#allocation6 + $0x82]]
    %v134 = vstv %s133
    %v135 = vmul.f32 %v134, %v87
    %v136 = vadd.f32 %v132, %v135
    %s137 = sld [smem:[#allocation6 + $0x102]]
    %v138 = vstv %s137
    %v139 = vmul.f32 %v138, %v89
    %v140 = vadd.f32 %v136, %v139
    %s141 = sld [smem:[#allocation6 + $0x182]]
    %v142 = vstv %s141
    %v143 = vmul.f32 %v142, %v91
    %v144 = vadd.f32 %v140, %v143
    %s145 = sld [smem:[#allocation7 + $0x2]]
    %v146 = vstv %s145
    %v147 = vadd.f32 %v144, %v146
    %v148 = vmax.f32 %v147, 0.0
    %s149 = sld [smem:[#allocation6 + $0x3]]
    %v150 = vstv %s149
    %v151 = vmul.f32 %v150, %v85
    %s152 = sld [smem:[#allocation6 + $0x83]]
    %v153 = vstv %s152
    %v154 = vmul.f32 %v153, %v87
    %v155 = vadd.f32 %v151, %v154
    %s156 = sld [smem:[#allocation6 + $0x103]]
    %v157 = vstv %s156
    %v158 = vmul.f32 %v157, %v89
    %v159 = vadd.f32 %v155, %v158
    %s160 = sld [smem:[#allocation6 + $0x183]]
    %v161 = vstv %s160
    %v162 = vmul.f32 %v161, %v91
    %v163 = vadd.f32 %v159, %v162
    %s164 = sld [smem:[#allocation7 + $0x3]]
    %v165 = vstv %s164
    %v166 = vadd.f32 %v163, %v165
    %v167 = vmax.f32 %v166, 0.0
    %s168 = sld [smem:[#allocation6 + $0x4]]
    %v169 = vstv %s168
    %v170 = vmul.f32 %v169, %v85
    %s171 = sld [smem:[#allocation6 + $0x84]]
    %v172 = vstv %s171
    %v173 = vmul.f32 %v172, %v87
    %v174 = vadd.f32 %v170, %v173
    %s175 = sld [smem:[#allocation6 + $0x104]]
    %v176 = vstv %s175
    %v177 = vmul.f32 %v176, %v89
    %v178 = vadd.f32 %v174, %v177
    %s179 = sld [smem:[#allocation6 + $0x184]]
    %v180 = vstv %s179
    %v181 = vmul.f32 %v180, %v91
    %v182 = vadd.f32 %v178, %v181
    %s183 = sld [smem:[#allocation7 + $0x4]]
    %v184 = vstv %s183
    %v185 = vadd.f32 %v182, %v184
    %v186 = vmax.f32 %v185, 0.0
    %s187 = sld [smem:[#allocation6 + $0x5]]
    %v188 = vstv %s187
    %v189 = vmul.f32 %v188, %v85
    %s190 = sld [smem:[#allocation6 + $0x85]]
    %v191 = vstv %s190
    %v192 = vmul.f32 %v191, %v87
    %v193 = vadd.f32 %v189, %v192
    %s194 = sld [smem:[#allocation6 + $0x105]]
    %v195 = vstv %s194
    %v196 = vmul.f32 %v195, %v89
    %v197 = vadd.f32 %v193, %v196
    %s198 = sld [smem:[#allocation6 + $0x185]]
    %v199 = vstv %s198
    %v200 = vmul.f32 %v199, %v91
    %v201 = vadd.f32 %v197, %v200
    %s202 = sld [smem:[#allocation7 + $0x5]]
    %v203 = vstv %s202
    %v204 = vadd.f32 %v201, %v203
    %v205 = vmax.f32 %v204, 0.0
    %s206 = sld [smem:[#allocation6 + $0x6]]
    %v207 = vstv %s206
    %v208 = vmul.f32 %v207, %v85
    %s209 = sld [smem:[#allocation6 + $0x86]]
    %v210 = vstv %s209
    %v211 = vmul.f32 %v210, %v87
    %v212 = vadd.f32 %v208, %v211
    %s213 = sld [smem:[#allocation6 + $0x106]]
    %v214 = vstv %s213
    %v215 = vmul.f32 %v214, %v89
    %v216 = vadd.f32 %v212, %v215
    %s217 = sld [smem:[#allocation6 + $0x186]]
    %v218 = vstv %s217
    %v219 = vmul.f32 %v218, %v91
    %v220 = vadd.f32 %v216, %v219
    %s221 = sld [smem:[#allocation7 + $0x6]]
    %v222 = vstv %s221
    %v223 = vadd.f32 %v220, %v222
    %v224 = vmax.f32 %v223, 0.0
    %s225 = sld [smem:[#allocation6 + $0x7]]
    %v226 = vstv %s225
    %v227 = vmul.f32 %v226, %v85
    %s228 = sld [smem:[#allocation6 + $0x87]]
    %v229 = vstv %s228
    %v230 = vmul.f32 %v229, %v87
    %v231 = vadd.f32 %v227, %v230
    %s232 = sld [smem:[#allocation6 + $0x107]]
    %v233 = vstv %s232
    %v234 = vmul.f32 %v233, %v89
    %v235 = vadd.f32 %v231, %v234
    %s236 = sld [smem:[#allocation6 + $0x187]]
    %v237 = vstv %s236
    %v238 = vmul.f32 %v237, %v91
    %v239 = vadd.f32 %v235, %v238
    %s240 = sld [smem:[#allocation7 + $0x7]]
    %v241 = vstv %s240
    %v242 = vadd.f32 %v239, %v241
    %v243 = vmax.f32 %v242, 0.0
    %s244 = sld [smem:[#allocation6 + $0x8]]
    %v245 = vstv %s244
    %v246 = vmul.f32 %v245, %v85
    %s247 = sld [smem:[#allocation6 + $0x88]]
    %v248 = vstv %s247
    %v249 = vmul.f32 %v248, %v87
    %v250 = vadd.f32 %v246, %v249
    %s251 = sld [smem:[#allocation6 + $0x108]]
    %v252 = vstv %s251
    %v253 = vmul.f32 %v252, %v89
    %v254 = vadd.f32 %v250, %v253
    %s255 = sld [smem:[#allocation6 + $0x188]]
    %v256 = vstv %s255
    %v257 = vmul.f32 %v256, %v91
    %v258 = vadd.f32 %v254, %v257
    %s259 = sld [smem:[#allocation7 + $0x8]]
    %v260 = vstv %s259
    %v261 = vadd.f32 %v258, %v260
    %v262 = vmax.f32 %v261, 0.0
    %s263 = sld [smem:[#allocation6 + $0x9]]
    %v264 = vstv %s263
    %v265 = vmul.f32 %v264, %v85
    %s266 = sld [smem:[#allocation6 + $0x89]]
    %v267 = vstv %s266
    %v268 = vmul.f32 %v267, %v87
    %v269 = vadd.f32 %v265, %v268
    %s270 = sld [smem:[#allocation6 + $0x109]]
    %v271 = vstv %s270
    %v272 = vmul.f32 %v271, %v89
    %v273 = vadd.f32 %v269, %v272
    %s274 = sld [smem:[#allocation6 + $0x189]]
    %v275 = vstv %s274
    %v276 = vmul.f32 %v275, %v91
    %v277 = vadd.f32 %v273, %v276
    %s278 = sld [smem:[#allocation7 + $0x9]]
    %v279 = vstv %s278
    %v280 = vadd.f32 %v277, %v279
    %v281 = vmax.f32 %v280, 0.0
    %s282 = sld [smem:[#allocation6 + $0xa]]
    %v283 = vstv %s282
    %v284 = vmul.f32 %v283, %v85
    %s285 = sld [smem:[#allocation6 + $0x8a]]
    %v286 = vstv %s285
    %v287 = vmul.f32 %v286, %v87
    %v288 = vadd.f32 %v284, %v287
    %s289 = sld [smem:[#allocation6 + $0x10a]]
    %v290 = vstv %s289
    %v291 = vmul.f32 %v290, %v89
    %v292 = vadd.f32 %v288, %v291
    %s293 = sld [smem:[#allocation6 + $0x18a]]
    %v294 = vstv %s293
    %v295 = vmul.f32 %v294, %v91
    %v296 = vadd.f32 %v292, %v295
    %s297 = sld [smem:[#allocation7 + $0xa]]
    %v298 = vstv %s297
    %v299 = vadd.f32 %v296, %v298
    %v300 = vmax.f32 %v299, 0.0
    %s301 = sld [smem:[#allocation6 + $0xb]]
    %v302 = vstv %s301
    %v303 = vmul.f32 %v302, %v85
    %s304 = sld [smem:[#allocation6 + $0x8b]]
    %v305 = vstv %s304
    %v306 = vmul.f32 %v305, %v87
    %v307 = vadd.f32 %v303, %v306
    %s308 = sld [smem:[#allocation6 + $0x10b]]
    %v309 = vstv %s308
    %v310 = vmul.f32 %v309, %v89
    %v311 = vadd.f32 %v307, %v310
    %s312 = sld [smem:[#allocation6 + $0x18b]]
    %v313 = vstv %s312
    %v314 = vmul.f32 %v313, %v91
    %v315 = vadd.f32 %v311, %v314
    %s316 = sld [smem:[#allocation7 + $0xb]]
    %v317 = vstv %s316
    %v318 = vadd.f32 %v315, %v317
    %v319 = vmax.f32 %v318, 0.0
    %s320 = sld [smem:[#allocation6 + $0xc]]
    %v321 = vstv %s320
    %v322 = vmul.f32 %v321, %v85
    %s323 = sld [smem:[#allocation6 + $0x8c]]
    %v324 = vstv %s323
    %v325 = vmul.f32 %v324, %v87
    %v326 = vadd.f32 %v322, %v325
    %s327 = sld [smem:[#allocation6 + $0x10c]]
    %v328 = vstv %s327
    %v329 = vmul.f32 %v328, %v89
    %v330 = vadd.f32 %v326, %v329
    %s331 = sld [smem:[#allocation6 + $0x18c]]
    %v332 = vstv %s331
    %v333 = vmul.f32 %v332, %v91
    %v334 = vadd.f32 %v330, %v333
    %s335 = sld [smem:[#allocation7 + $0xc]]
    %v336 = vstv %s335
    %v337 = vadd.f32 %v334, %v336
    %v338 = vmax.f32 %v337, 0.0
    %s339 = sld [smem:[#allocation6 + $0xd]]
    %v340 = vstv %s339
    %v341 = vmul.f32 %v340, %v85
    %s342 = sld [smem:[#allocation6 + $0x8d]]
    %v343 = vstv %s342
    %v344 = vmul.f32 %v343, %v87
    %v345 = vadd.f32 %v341, %v344
    %s346 = sld [smem:[#allocation6 + $0x10d]]
    %v347 = vstv %s346
    %v348 = vmul.f32 %v347, %v89
    %v349 = vadd.f32 %v345, %v348
    %s350 = sld [smem:[#allocation6 + $0x18d]]
    %v351 = vstv %s350
    %v352 = vmul.f32 %v351, %v91
    %v353 = vadd.f32 %v349, %v352
    %s354 = sld [smem:[#allocation7 + $0xd]]
    %v355 = vstv %s354
    %v356 = vadd.f32 %v353, %v355
    %v357 = vmax.f32 %v356, 0.0
    %s358 = sld [smem:[#allocation6 + $0xe]]
    %v359 = vstv %s358
    %v360 = vmul.f32 %v359, %v85
    %s361 = sld [smem:[#allocation6 + $0x8e]]
    %v362 = vstv %s361
    %v363 = vmul.f32 %v362, %v87
    %v364 = vadd.f32 %v360, %v363
    %s365 = sld [smem:[#allocation6 + $0x10e]]
    %v366 = vstv %s365
    %v367 = vmul.f32 %v366, %v89
    %v368 = vadd.f32 %v364, %v367
    %s369 = sld [smem:[#allocation6 + $0x18e]]
    %v370 = vstv %s369
    %v371 = vmul.f32 %v370, %v91
    %v372 = vadd.f32 %v368, %v371
    %s373 = sld [smem:[#allocation7 + $0xe]]
    %v374 = vstv %s373
    %v375 = vadd.f32 %v372, %v374
    %v376 = vmax.f32 %v375, 0.0
    %s377 = sld [smem:[#allocation6 + $0xf]]
    %v378 = vstv %s377
    %v379 = vmul.f32 %v378, %v85
    %s380 = sld [smem:[#allocation6 + $0x8f]]
    %v381 = vstv %s380
    %v382 = vmul.f32 %v381, %v87
    %v383 = vadd.f32 %v379, %v382
    %s384 = sld [smem:[#allocation6 + $0x10f]]
    %v385 = vstv %s384
    %v386 = vmul.f32 %v385, %v89
    %v387 = vadd.f32 %v383, %v386
    %s388 = sld [smem:[#allocation6 + $0x18f]]
    %v389 = vstv %s388
    %v390 = vmul.f32 %v389, %v91
    %v391 = vadd.f32 %v387, %v390
    %s392 = sld [smem:[#allocation7 + $0xf]]
    %v393 = vstv %s392
    %v394 = vadd.f32 %v391, %v393
    %v395 = vmax.f32 %v394, 0.0
    %s396 = sld [smem:[#allocation9]]
    %v397 = vstv %s396
    %v398 = vmul.f32 %v397, %v110
    %s399 = sld [smem:[#allocation9 + $0x80]]
    %v400 = vstv %s399
    %v401 = vmul.f32 %v400, %v129
    %v402 = vadd.f32 %v398, %v401
    %s403 = sld [smem:[#allocation9 + $0x100]]
    %v404 = vstv %s403
    %v405 = vmul.f32 %v404, %v148
    %v406 = vadd.f32 %v402, %v405
    %s407 = sld [smem:[#allocation9 + $0x180]]
    %v408 = vstv %s407
    %v409 = vmul.f32 %v408, %v167
    %v410 = vadd.f32 %v406, %v409
    %s411 = sld [smem:[#allocation9 + $0x200]]
    %v412 = vstv %s411
    %v413 = vmul.f32 %v412, %v186
    %v414 = vadd.f32 %v410, %v413
    %s415 = sld [smem:[#allocation9 + $0x280]]
    %v416 = vstv %s415
    %v417 = vmul.f32 %v416, %v205
    %v418 = vadd.f32 %v414, %v417
    %s419 = sld [smem:[#allocation9 + $0x300]]
    %v420 = vstv %s419
    %v421 = vmul.f32 %v420, %v224
    %v422 = vadd.f32 %v418, %v421
    %s423 = sld [smem:[#allocation9 + $0x380]]
    %v424 = vstv %s423
    %v425 = vmul.f32 %v424, %v243
    %v426 = vadd.f32 %v422, %v425
    %s427 = sld [smem:[#allocation9 + $0x400]]
    %v428 = vstv %s427
    %v429 = vmul.f32 %v428, %v262
    %v430 = vadd.f32 %v426, %v429
    %s431 = sld [smem:[#allocation9 + $0x480]]
    %v432 = vstv %s431
    %v433 = vmul.f32 %v432, %v281
    %v434 = vadd.f32 %v430, %v433
    %s435 = sld [smem:[#allocation9 + $0x500]]
    %v436 = vstv %s435
    %v437 = vmul.f32 %v436, %v300
    %v438 = vadd.f32 %v434, %v437
    %s439 = sld [smem:[#allocation9 + $0x580]]
    %v440 = vstv %s439
    %v441 = vmul.f32 %v440, %v319
    %v442 = vadd.f32 %v438, %v441
    %s443 = sld [smem:[#allocation9 + $0x600]]
    %v444 = vstv %s443
    %v445 = vmul.f32 %v444, %v338
    %v446 = vadd.f32 %v442, %v445
    %s447 = sld [smem:[#allocation9 + $0x680]]
    %v448 = vstv %s447
    %v449 = vmul.f32 %v448, %v357
    %v450 = vadd.f32 %v446, %v449
    %s451 = sld [smem:[#allocation9 + $0x700]]
    %v452 = vstv %s451
    %v453 = vmul.f32 %v452, %v376
    %v454 = vadd.f32 %v450, %v453
    %s455 = sld [smem:[#allocation9 + $0x780]]
    %v456 = vstv %s455
    %v457 = vmul.f32 %v456, %v395
    %v458 = vadd.f32 %v454, %v457
    %s459 = sld [smem:[#allocation10]]
    %v460 = vstv %s459
    %v461 = vadd.f32 %v458, %v460
    %s462 = sld [smem:[#allocation9 + $0x1]]
    %v463 = vstv %s462
    %v464 = vmul.f32 %v463, %v110
    %s465 = sld [smem:[#allocation9 + $0x81]]
    %v466 = vstv %s465
    %v467 = vmul.f32 %v466, %v129
    %v468 = vadd.f32 %v464, %v467
    %s469 = sld [smem:[#allocation9 + $0x101]]
    %v470 = vstv %s469
    %v471 = vmul.f32 %v470, %v148
    %v472 = vadd.f32 %v468, %v471
    %s473 = sld [smem:[#allocation9 + $0x181]]
    %v474 = vstv %s473
    %v475 = vmul.f32 %v474, %v167
    %v476 = vadd.f32 %v472, %v475
    %s477 = sld [smem:[#allocation9 + $0x201]]
    %v478 = vstv %s477
    %v479 = vmul.f32 %v478, %v186
    %v480 = vadd.f32 %v476, %v479
    %s481 = sld [smem:[#allocation9 + $0x281]]
    %v482 = vstv %s481
    %v483 = vmul.f32 %v482, %v205
    %v484 = vadd.f32 %v480, %v483
    %s485 = sld [smem:[#allocation9 + $0x301]]
    %v486 = vstv %s485
    %v487 = vmul.f32 %v486, %v224
    %v488 = vadd.f32 %v484, %v487
    %s489 = sld [smem:[#allocation9 + $0x381]]
    %v490 = vstv %s489
    %v491 = vmul.f32 %v490, %v243
    %v492 = vadd.f32 %v488, %v491
    %s493 = sld [smem:[#allocation9 + $0x401]]
    %v494 = vstv %s493
    %v495 = vmul.f32 %v494, %v262
    %v496 = vadd.f32 %v492, %v495
    %s497 = sld [smem:[#allocation9 + $0x481]]
    %v498 = vstv %s497
    %v499 = vmul.f32 %v498, %v281
    %v500 = vadd.f32 %v496, %v499
    %s501 = sld [smem:[#allocation9 + $0x501]]
    %v502 = vstv %s501
    %v503 = vmul.f32 %v502, %v300
    %v504 = vadd.f32 %v500, %v503
    %s505 = sld [smem:[#allocation9 + $0x581]]
    %v506 = vstv %s505
    %v507 = vmul.f32 %v506, %v319
    %v508 = vadd.f32 %v504, %v507
    %s509 = sld [smem:[#allocation9 + $0x601]]
    %v510 = vstv %s509
    %v511 = vmul.f32 %v510, %v338
    %v512 = vadd.f32 %v508, %v511
    %s513 = sld [smem:[#allocation9 + $0x681]]
    %v514 = vstv %s513
    %v515 = vmul.f32 %v514, %v357
    %v516 = vadd.f32 %v512, %v515
    %s517 = sld [smem:[#allocation9 + $0x701]]
    %v518 = vstv %s517
    %v519 = vmul.f32 %v518, %v376
    %v520 = vadd.f32 %v516, %v519
    %s521 = sld [smem:[#allocation9 + $0x781]]
    %v522 = vstv %s521
    %v523 = vmul.f32 %v522, %v395
    %v524 = vadd.f32 %v520, %v523
    %s525 = sld [smem:[#allocation10 + $0x1]]
    %v526 = vstv %s525
    %v527 = vadd.f32 %v524, %v526
    %v528 = vmax.f32 %v461, %v527
    %v529 = vsub.f32 %v461, %v528
    %v530 = vmul.f32 %v529, 1.442695
    %v531 = vpow.pop %v530
    %v532 = vsub.f32 %v527, %v528
    %v533 = vmul.f32 %v532, 1.442695
    %v534 = vpow.pop %v533
    %v535 = vadd.f32 %v531, %v534
    %v536 = vrcp.pop %v535
    %v537 = vmul.f32 1.0, %v536
    %v538 = vmul.f32 %v531, %v537
    %539 = vst [vmem:[#allocation12] sm:$0xff] %v538
    %v540 = vmul.f32 %v534, %v537
    %s541 = scalar_lea.vmem [#allocation12], 8
    %542 = vst [vmem:[%s541] sm:$0xff] %v540
    // Predicated region
    $region42: #{tpu_custom_call.1} parent=1 // pred_check
      _
    $region43: #{tpu_custom_call.1} parent=1 // pred_check_branch
      %544 = sbr.rel (0) target = $region45
    $region44: #{tpu_custom_call.1} parent=1 // pred_region
      %s546 = ssub.s32 256, 256
      %547 = vsyncadd [#allocation4], %s546
      %s548 = sshll.u32 [#allocation12], 4
      %s549 = int_to_ptr.vmem [resolvable:$true] %s548
      %554 = dma.vmem_to_hbm [thread:$0]  %s549, 256, %s5, [#allocation4], 128, 128, 8
    $region45: #{tpu_custom_call.1} parent=1 // pred_fallthru
      _
    // Predicated region
    $region46: #{tpu_custom_call.1} parent=1 // pred_check
      _
    $region47: #{tpu_custom_call.1} parent=1 // pred_check_branch
      %556 = sbr.rel (0) target = $region49
    $region48: #{tpu_custom_call.1} parent=1 // pred_region
      %557 = dma.done [#allocation4], 256
    $region49: #{tpu_custom_call.1} parent=1 // pred_fallthru
      _
    %558 = vsyncpa [#allocation3], 1
    %559 = vsyncpa [#allocation4], 1
    %560 = vsyncpa [#allocation5], 1
    %561 = vsyncpa [#allocation8], 1
    %562 = vsyncpa [#allocation11], 1

</llo_original>
